<compile_context>
chip_gen: v6e
topology: v6e:2x2x1
jax: 0.10.0
libtpu: 0.0.40
codegen_flags: <defaults>
</compile_context>

<pallas_src>
import math

import jax
import jax.numpy as jnp
from jax.experimental import pallas as pl
from jax.experimental.pallas import tpu as pltpu

NUM_CLASSES = 16
GAMMA = 2.0
SMOOTHING = 0.1
EPS = 1e-6
FOCAL_WEIGHT = 1.0
SMOOTH_WEIGHT = 0.1
LOG_0999 = math.log(0.999)
# contrast_weight / distill_weight multiply exact zeros in this call path.


def _round_up(x, m):
    return ((x + m - 1) // m) * m


def hybrid_loss_kernel(logits_ref, tgt_ref, out_ref,
                       cnt_ref, s_ref, ce_ref, lp_ref):
    i = pl.program_id(0)

    @pl.when(i == 0)
    def _init():
        cnt_ref[...] = jnp.zeros_like(cnt_ref)
        s_ref[...] = jnp.zeros_like(s_ref)
        ce_ref[...] = jnp.zeros_like(ce_ref)
        lp_ref[...] = jnp.zeros_like(lp_ref)

    x = logits_ref[...].astype(jnp.float32)   # [C, bn]  classes on sublanes, samples lane-dense
    tgt = tgt_ref[...]                        # [1, bn]  int32 (-1 marks padded columns)
    C = x.shape[0]

    class_ids = jax.lax.broadcasted_iota(jnp.int32, x.shape, 0)
    onehot = (tgt == class_ids).astype(jnp.float32)       # [C, bn]; all-zero for padded cols

    # per-sample (per-lane) log-softmax over the class (sublane) axis
    m = jnp.max(x, axis=0, keepdims=True)                 # [1, bn]
    sh = x - m
    lse = jnp.log(jnp.sum(jnp.exp(sh), axis=0, keepdims=True))
    logp = sh - lse                                       # [C, bn]

    ce = -jnp.sum(onehot * logp, axis=0, keepdims=True)   # [1, bn] (0 for padded cols)
    valid = jnp.sum(onehot, axis=0, keepdims=True)        # [1, bn] 1 = real sample, 0 = padding

    pt = jnp.exp(-ce)
    omp = 1.0 - pt
    gamma = GAMMA * omp
    base = jnp.maximum(omp, 1e-30)
    pw = jnp.exp(gamma * jnp.log(base))                   # (1-pt)**gamma with 0**0 -> 1
    contrib = pw * ce                                     # [1, bn]

    # running accumulators (persist across grid steps in VMEM scratch)
    cnt_ref[...] += jnp.sum(onehot, axis=1, keepdims=True)            # [C,1] class histogram
    s_ref[...] += jnp.sum(onehot * contrib, axis=1, keepdims=True)    # [C,1] per-class Σ pw*ce
    ce_ref[...] += jnp.sum(ce, axis=1, keepdims=True)                 # [1,1] Σ ce
    lp_ref[...] += jnp.sum(valid * jnp.sum(logp, axis=0, keepdims=True),
                           axis=1, keepdims=True)                     # [1,1] Σ_rows Σ_c logp

    @pl.when(i == pl.num_programs(0) - 1)
    def _finalize():
        counts = cnt_ref[...]                                   # [C,1]
        n_tot = jnp.sum(counts, axis=0, keepdims=True)          # [1,1] == number of real samples
        class_freq = counts / (n_tot + EPS)
        effective_num = 1.0 - jnp.exp(counts * LOG_0999)        # 1 - 0.999**counts
        weights = (1.0 - class_freq) / (effective_num + EPS)
        alpha = weights / jnp.sum(weights, axis=0, keepdims=True)

        # focal = Σ_i alpha[t_i] * pw_i * ce_i / N  ==  Σ_c alpha_c * S_c / N
        focal_loss = jnp.sum(alpha * s_ref[...], axis=0, keepdims=True) / n_tot

        off = SMOOTHING / (C - 1)
        conf = 1.0 - SMOOTHING
        # fused label smoothing: sum(-true_dist*logp) = -off*Σlogp + (conf-off)*Σce
        smooth_loss = (-off * lp_ref[...] + (conf - off) * ce_ref[...]) / n_tot

        out_ref[...] = FOCAL_WEIGHT * focal_loss + SMOOTH_WEIGHT * smooth_loss


def improved_hybrid_loss(logits, targets, *, block_n=1024):
    """logits: [N, C] float32/bfloat16, targets: [N] int -> scalar float32."""
    N, C = logits.shape
    bn = min(block_n, _round_up(N, 128))
    n_pad = _round_up(N, bn)

    # Lane-dense layout: classes -> sublanes, samples -> lanes (keep input dtype; upcast in-kernel).
    logits_t = jnp.transpose(logits)                          # [C, N]
    targets_l = targets.astype(jnp.int32).reshape(1, N)       # [1, N]
    if n_pad != N:
        logits_t = jnp.pad(logits_t, ((0, 0), (0, n_pad - N)))
        targets_l = jnp.pad(targets_l, ((0, 0), (0, n_pad - N)), constant_values=-1)

    out = pl.pallas_call(
        hybrid_loss_kernel,
        out_shape=jax.ShapeDtypeStruct((1, 1), jnp.float32),
        grid=(n_pad // bn,),
        in_specs=[
            pl.BlockSpec((C, bn), lambda i: (0, i)),
            pl.BlockSpec((1, bn), lambda i: (0, i)),
        ],
        out_specs=pl.BlockSpec((1, 1), lambda i: (0, 0)),
        scratch_shapes=[
            pltpu.VMEM((C, 1), jnp.float32),   # per-class counts
            pltpu.VMEM((C, 1), jnp.float32),   # per-class Σ pw*ce
            pltpu.VMEM((1, 1), jnp.float32),   # Σ ce
            pltpu.VMEM((1, 1), jnp.float32),   # Σ logp (valid rows only)
        ],
        compiler_params=pltpu.CompilerParams(
            dimension_semantics=("arbitrary",)),
    )(logits_t, targets_l)
    return out[0, 0]


def reference_loss(logits, targets):
    """Pure-JAX reference mirroring the PyTorch forward (first call, fresh buffers)."""
    N, C = logits.shape
    logits = logits.astype(jnp.float32)
    onehot = jax.nn.one_hot(targets, C, dtype=jnp.float32)
    counts = onehot.sum(0)
    class_freq = counts / (N + EPS)
    effective_num = 1.0 - jnp.power(0.999, counts)
    weights = (1.0 - class_freq) / (effective_num + EPS)
    alpha_vec = weights / weights.sum()
    alpha = alpha_vec[targets]
    logp = jax.nn.log_softmax(logits, axis=-1)
    ce = -(onehot * logp).sum(-1)
    pt = jnp.exp(-ce)
    gamma = GAMMA * (1.0 - pt)
    focal = (alpha * jnp.power(jnp.maximum(1.0 - pt, 1e-30), gamma) * ce).mean()
    off = SMOOTHING / (C - 1)
    true_dist = off + onehot * ((1.0 - SMOOTHING) - off)
    smooth = jnp.mean(jnp.sum(-true_dist * logp, axis=-1))
    return FOCAL_WEIGHT * focal + SMOOTH_WEIGHT * smooth


if __name__ == "__main__":
    key = jax.random.PRNGKey(0)
    k1, k2, k3, k4 = jax.random.split(key, 4)

    # case 1: tiny batch, single (lane-padded) block
    N1 = 8
    logits1 = jax.random.normal(k1, (N1, NUM_CLASSES), dtype=jnp.float32)
    targets1 = jax.random.randint(k2, (N1,), 0, NUM_CLASSES, dtype=jnp.int32)
    loss1 = improved_hybrid_loss(logits1, targets1)
    jax.block_until_ready(loss1)
    ref1 = reference_loss(logits1, targets1)
    assert jnp.allclose(loss1, ref1, rtol=1e-4, atol=1e-5), (loss1, ref1)

    # case 2: multi-block grid with accumulator carry + padding mask exercised
    N2 = 200
    logits2 = jax.random.normal(k3, (N2, NUM_CLASSES), dtype=jnp.float32)
    targets2 = jax.random.randint(k4, (N2,), 0, NUM_CLASSES, dtype=jnp.int32)
    loss2 = improved_hybrid_loss(logits2, targets2, block_n=128)
    jax.block_until_ready(loss2)
    ref2 = reference_loss(logits2, targets2)
    assert jnp.allclose(loss2, ref2, rtol=1e-4, atol=1e-5), (loss2, ref2)

    print("KERNEL_OK")
</pallas_src>

<mosaic_0001>
module attributes {stable_mosaic.version = 11 : i64} {
  func.func @hybrid_loss_kernel(%arg0: i32, %arg1: memref<16x128xf32, #tpu.memory_space<vmem>>, %arg2: memref<1x128xi32, #tpu.memory_space<vmem>>, %arg3: memref<1x1xf32, #tpu.memory_space<vmem>>, %arg4: memref<16x1xf32, #tpu.memory_space<vmem>>, %arg5: memref<16x1xf32, #tpu.memory_space<vmem>>, %arg6: memref<1x1xf32, #tpu.memory_space<vmem>>, %arg7: memref<1x1xf32, #tpu.memory_space<vmem>>) attributes {dimension_semantics = [#tpu.dimension_semantics<arbitrary>], iteration_bounds = array<i64: 1>, scalar_prefetch = 0 : i64, scratch_operands = 4 : i64, tpu.core_type = #tpu.core_type<tc>, window_params = [{transform_indices = @transform_0, window_bounds = array<i64: 16, 128>}, {transform_indices = @transform_1, window_bounds = array<i64: 1, 128>}, {pipeline_mode = #tpu.pipeline_mode<synchronous>, transform_indices = @transform_2, window_bounds = array<i64: 1, 1>}]} {
    %c0_i32 = arith.constant 0 : i32
    %0 = arith.cmpi eq, %arg0, %c0_i32 : i32
    %1 = arith.extui %0 : i1 to i32
    %c0_i32_0 = arith.constant 0 : i32
    %2 = arith.cmpi ne, %1, %c0_i32_0 : i32
    scf.if %2 {
      %cst_35 = arith.constant 0.000000e+00 : f32
      %68 = vector.broadcast %cst_35 : f32 to vector<16x1xf32>
      %c0_36 = arith.constant 0 : index
      %c0_37 = arith.constant 0 : index
      %69 = vector.load %arg4[%c0_36, %c0_37] : memref<16x1xf32, #tpu.memory_space<vmem>>, vector<16x1xf32>
      tpu.vector_store %arg4[%c0_36, %c0_37], %68 {strides = array<i32>} : memref<16x1xf32, #tpu.memory_space<vmem>>, vector<16x1xf32>,
      %cst_38 = arith.constant 0.000000e+00 : f32
      %70 = vector.broadcast %cst_38 : f32 to vector<16x1xf32>
      %c0_39 = arith.constant 0 : index
      %c0_40 = arith.constant 0 : index
      %71 = vector.load %arg5[%c0_39, %c0_40] : memref<16x1xf32, #tpu.memory_space<vmem>>, vector<16x1xf32>
      tpu.vector_store %arg5[%c0_39, %c0_40], %70 {strides = array<i32>} : memref<16x1xf32, #tpu.memory_space<vmem>>, vector<16x1xf32>,
      %cst_41 = arith.constant 0.000000e+00 : f32
      %72 = vector.broadcast %cst_41 : f32 to vector<1x1xf32>
      %c0_42 = arith.constant 0 : index
      %c0_43 = arith.constant 0 : index
      %73 = vector.load %arg6[%c0_42, %c0_43] : memref<1x1xf32, #tpu.memory_space<vmem>>, vector<1x1xf32>
      tpu.vector_store %arg6[%c0_42, %c0_43], %72 {strides = array<i32>} : memref<1x1xf32, #tpu.memory_space<vmem>>, vector<1x1xf32>,
      %cst_44 = arith.constant 0.000000e+00 : f32
      %74 = vector.broadcast %cst_44 : f32 to vector<1x1xf32>
      %c0_45 = arith.constant 0 : index
      %c0_46 = arith.constant 0 : index
      %75 = vector.load %arg7[%c0_45, %c0_46] : memref<1x1xf32, #tpu.memory_space<vmem>>, vector<1x1xf32>
      tpu.vector_store %arg7[%c0_45, %c0_46], %74 {strides = array<i32>} : memref<1x1xf32, #tpu.memory_space<vmem>>, vector<1x1xf32>,
    } else {
    }
    %c0 = arith.constant 0 : index
    %c0_1 = arith.constant 0 : index
    %3 = vector.load %arg1[%c0, %c0_1] : memref<16x128xf32, #tpu.memory_space<vmem>>, vector<16x128xf32>
    %c0_2 = arith.constant 0 : index
    %c0_3 = arith.constant 0 : index
    %4 = vector.load %arg2[%c0_2, %c0_3] : memref<1x128xi32, #tpu.memory_space<vmem>>, vector<1x128xi32>
    %5 = tpu.iota {dimensions = array<i32: 0>} : vector<16x128xi32>
    %6 = vector.broadcast %4 : vector<1x128xi32> to vector<16x128xi32>
    %7 = arith.cmpi eq, %6, %5 : vector<16x128xi32>
    %8 = arith.extui %7 : vector<16x128xi1> to vector<16x128xi32>
    %9 = arith.sitofp %8 : vector<16x128xi32> to vector<16x128xf32>
    %cst = arith.constant dense<0xFF800000> : vector<128xf32>
    %10 = vector.multi_reduction <maximumf>, %3, %cst [0] : vector<16x128xf32> to vector<128xf32>
    %11 = vector.shape_cast %10 : vector<128xf32> to vector<1x128xf32>
    %12 = vector.broadcast %11 : vector<1x128xf32> to vector<16x128xf32>
    %13 = arith.subf %3, %12 : vector<16x128xf32>
    %14 = math.exp %13 : vector<16x128xf32>
    %cst_4 = arith.constant dense<0.000000e+00> : vector<128xf32>
    %15 = vector.multi_reduction <add>, %14, %cst_4 [0] : vector<16x128xf32> to vector<128xf32>
    %16 = vector.shape_cast %15 : vector<128xf32> to vector<1x128xf32>
    %17 = math.log %16 : vector<1x128xf32>
    %18 = vector.broadcast %17 : vector<1x128xf32> to vector<16x128xf32>
    %19 = arith.subf %13, %18 : vector<16x128xf32>
    %20 = arith.mulf %9, %19 : vector<16x128xf32>
    %cst_5 = arith.constant dense<0.000000e+00> : vector<128xf32>
    %21 = vector.multi_reduction <add>, %20, %cst_5 [0] : vector<16x128xf32> to vector<128xf32>
    %22 = vector.shape_cast %21 : vector<128xf32> to vector<1x128xf32>
    %cst_6 = arith.constant 0.000000e+00 : f32
    %23 = vector.broadcast %cst_6 : f32 to vector<1x128xf32>
    %24 = arith.subf %23, %22 : vector<1x128xf32>
    %cst_7 = arith.constant dense<0.000000e+00> : vector<128xf32>
    %25 = vector.multi_reduction <add>, %9, %cst_7 [0] : vector<16x128xf32> to vector<128xf32>
    %26 = vector.shape_cast %25 : vector<128xf32> to vector<1x128xf32>
    %cst_8 = arith.constant 0.000000e+00 : f32
    %27 = vector.broadcast %cst_8 : f32 to vector<1x128xf32>
    %28 = arith.subf %27, %24 : vector<1x128xf32>
    %29 = math.exp %28 : vector<1x128xf32>
    %cst_9 = arith.constant 1.000000e+00 : f32
    %30 = vector.broadcast %cst_9 : f32 to vector<1x128xf32>
    %31 = arith.subf %30, %29 : vector<1x128xf32>
    %cst_10 = arith.constant 2.000000e+00 : f32
    %32 = vector.broadcast %cst_10 : f32 to vector<1x128xf32>
    %33 = arith.mulf %32, %31 : vector<1x128xf32>
    %cst_11 = arith.constant 1.000000e-30 : f32
    %34 = vector.broadcast %cst_11 : f32 to vector<1x128xf32>
    %35 = arith.maximumf %31, %34 : vector<1x128xf32>
    %36 = math.log %35 : vector<1x128xf32>
    %37 = arith.mulf %33, %36 : vector<1x128xf32>
    %38 = math.exp %37 : vector<1x128xf32>
    %39 = arith.mulf %38, %24 : vector<1x128xf32>
    %c0_12 = arith.constant 0 : index
    %c0_13 = arith.constant 0 : index
    %40 = vector.load %arg4[%c0_12, %c0_13] : memref<16x1xf32, #tpu.memory_space<vmem>>, vector<16x1xf32>
    %cst_14 = arith.constant dense<0.000000e+00> : vector<16xf32>
    %41 = vector.multi_reduction <add>, %9, %cst_14 [1] : vector<16x128xf32> to vector<16xf32>
    %42 = vector.shape_cast %41 : vector<16xf32> to vector<16x1xf32>
    %43 = arith.addf %40, %42 : vector<16x1xf32>
    %c0_15 = arith.constant 0 : index
    %c0_16 = arith.constant 0 : index
    %44 = vector.load %arg4[%c0_15, %c0_16] : memref<16x1xf32, #tpu.memory_space<vmem>>, vector<16x1xf32>
    tpu.vector_store %arg4[%c0_15, %c0_16], %43 {strides = array<i32>} : memref<16x1xf32, #tpu.memory_space<vmem>>, vector<16x1xf32>,
    %c0_17 = arith.constant 0 : index
    %c0_18 = arith.constant 0 : index
    %45 = vector.load %arg5[%c0_17, %c0_18] : memref<16x1xf32, #tpu.memory_space<vmem>>, vector<16x1xf32>
    %46 = vector.broadcast %39 : vector<1x128xf32> to vector<16x128xf32>
    %47 = arith.mulf %9, %46 : vector<16x128xf32>
    %cst_19 = arith.constant dense<0.000000e+00> : vector<16xf32>
    %48 = vector.multi_reduction <add>, %47, %cst_19 [1] : vector<16x128xf32> to vector<16xf32>
    %49 = vector.shape_cast %48 : vector<16xf32> to vector<16x1xf32>
    %50 = arith.addf %45, %49 : vector<16x1xf32>
    %c0_20 = arith.constant 0 : index
    %c0_21 = arith.constant 0 : index
    %51 = vector.load %arg5[%c0_20, %c0_21] : memref<16x1xf32, #tpu.memory_space<vmem>>, vector<16x1xf32>
    tpu.vector_store %arg5[%c0_20, %c0_21], %50 {strides = array<i32>} : memref<16x1xf32, #tpu.memory_space<vmem>>, vector<16x1xf32>,
    %c0_22 = arith.constant 0 : index
    %c0_23 = arith.constant 0 : index
    %52 = vector.load %arg6[%c0_22, %c0_23] : memref<1x1xf32, #tpu.memory_space<vmem>>, vector<1x1xf32>
    %cst_24 = arith.constant dense<0.000000e+00> : vector<1xf32>
    %53 = vector.multi_reduction <add>, %24, %cst_24 [1] : vector<1x128xf32> to vector<1xf32>
    %54 = vector.shape_cast %53 : vector<1xf32> to vector<1x1xf32>
    %55 = arith.addf %52, %54 : vector<1x1xf32>
    %c0_25 = arith.constant 0 : index
    %c0_26 = arith.constant 0 : index
    %56 = vector.load %arg6[%c0_25, %c0_26] : memref<1x1xf32, #tpu.memory_space<vmem>>, vector<1x1xf32>
    tpu.vector_store %arg6[%c0_25, %c0_26], %55 {strides = array<i32>} : memref<1x1xf32, #tpu.memory_space<vmem>>, vector<1x1xf32>,
    %c0_27 = arith.constant 0 : index
    %c0_28 = arith.constant 0 : index
    %57 = vector.load %arg7[%c0_27, %c0_28] : memref<1x1xf32, #tpu.memory_space<vmem>>, vector<1x1xf32>
    %cst_29 = arith.constant dense<0.000000e+00> : vector<128xf32>
    %58 = vector.multi_reduction <add>, %19, %cst_29 [0] : vector<16x128xf32> to vector<128xf32>
    %59 = vector.shape_cast %58 : vector<128xf32> to vector<1x128xf32>
    %60 = arith.mulf %26, %59 : vector<1x128xf32>
    %cst_30 = arith.constant dense<0.000000e+00> : vector<1xf32>
    %61 = vector.multi_reduction <add>, %60, %cst_30 [1] : vector<1x128xf32> to vector<1xf32>
    %62 = vector.shape_cast %61 : vector<1xf32> to vector<1x1xf32>
    %63 = arith.addf %57, %62 : vector<1x1xf32>
    %c0_31 = arith.constant 0 : index
    %c0_32 = arith.constant 0 : index
    %64 = vector.load %arg7[%c0_31, %c0_32] : memref<1x1xf32, #tpu.memory_space<vmem>>, vector<1x1xf32>
    tpu.vector_store %arg7[%c0_31, %c0_32], %63 {strides = array<i32>} : memref<1x1xf32, #tpu.memory_space<vmem>>, vector<1x1xf32>,
    %c0_i32_33 = arith.constant 0 : i32
    %65 = arith.cmpi eq, %arg0, %c0_i32_33 : i32
    %66 = arith.extui %65 : i1 to i32
    %c0_i32_34 = arith.constant 0 : i32
    %67 = arith.cmpi ne, %66, %c0_i32_34 : i32
    scf.if %67 {
      %c0_35 = arith.constant 0 : index
      %c0_36 = arith.constant 0 : index
      %68 = vector.load %arg4[%c0_35, %c0_36] : memref<16x1xf32, #tpu.memory_space<vmem>>, vector<16x1xf32>
      %cst_37 = arith.constant dense<0.000000e+00> : vector<1xf32>
      %69 = vector.multi_reduction <add>, %68, %cst_37 [0] : vector<16x1xf32> to vector<1xf32>
      %70 = vector.shape_cast %69 : vector<1xf32> to vector<1x1xf32>
      %cst_38 = arith.constant 9.99999997E-7 : f32
      %71 = vector.broadcast %cst_38 : f32 to vector<1x1xf32>
      %72 = arith.addf %70, %71 : vector<1x1xf32>
      %73 = vector.broadcast %72 : vector<1x1xf32> to vector<16x1xf32>
      %74 = arith.divf %68, %73 : vector<16x1xf32>
      %cst_39 = arith.constant -0.00100050028 : f32
      %75 = vector.broadcast %cst_39 : f32 to vector<16x1xf32>
      %76 = arith.mulf %68, %75 : vector<16x1xf32>
      %77 = math.exp %76 : vector<16x1xf32>
      %cst_40 = arith.constant 1.000000e+00 : f32
      %78 = vector.broadcast %cst_40 : f32 to vector<16x1xf32>
      %79 = arith.subf %78, %77 : vector<16x1xf32>
      %cst_41 = arith.constant 1.000000e+00 : f32
      %80 = vector.broadcast %cst_41 : f32 to vector<16x1xf32>
      %81 = arith.subf %80, %74 : vector<16x1xf32>
      %cst_42 = arith.constant 9.99999997E-7 : f32
      %82 = vector.broadcast %cst_42 : f32 to vector<16x1xf32>
      %83 = arith.addf %79, %82 : vector<16x1xf32>
      %84 = arith.divf %81, %83 : vector<16x1xf32>
      %cst_43 = arith.constant dense<0.000000e+00> : vector<1xf32>
      %85 = vector.multi_reduction <add>, %84, %cst_43 [0] : vector<16x1xf32> to vector<1xf32>
      %86 = vector.shape_cast %85 : vector<1xf32> to vector<1x1xf32>
      %87 = vector.broadcast %86 : vector<1x1xf32> to vector<16x1xf32>
      %88 = arith.divf %84, %87 : vector<16x1xf32>
      %c0_44 = arith.constant 0 : index
      %c0_45 = arith.constant 0 : index
      %89 = vector.load %arg5[%c0_44, %c0_45] : memref<16x1xf32, #tpu.memory_space<vmem>>, vector<16x1xf32>
      %90 = arith.mulf %88, %89 : vector<16x1xf32>
      %cst_46 = arith.constant dense<0.000000e+00> : vector<1xf32>
      %91 = vector.multi_reduction <add>, %90, %cst_46 [0] : vector<16x1xf32> to vector<1xf32>
      %92 = vector.shape_cast %91 : vector<1xf32> to vector<1x1xf32>
      %93 = arith.divf %92, %70 : vector<1x1xf32>
      %c0_47 = arith.constant 0 : index
      %c0_48 = arith.constant 0 : index
      %94 = vector.load %arg7[%c0_47, %c0_48] : memref<1x1xf32, #tpu.memory_space<vmem>>, vector<1x1xf32>
      %cst_49 = arith.constant -0.00666666683 : f32
      %95 = vector.broadcast %cst_49 : f32 to vector<1x1xf32>
      %96 = arith.mulf %95, %94 : vector<1x1xf32>
      %c0_50 = arith.constant 0 : index
      %c0_51 = arith.constant 0 : index
      %97 = vector.load %arg6[%c0_50, %c0_51] : memref<1x1xf32, #tpu.memory_space<vmem>>, vector<1x1xf32>
      %cst_52 = arith.constant 0.893333315 : f32
      %98 = vector.broadcast %cst_52 : f32 to vector<1x1xf32>
      %99 = arith.mulf %98, %97 : vector<1x1xf32>
      %100 = arith.addf %96, %99 : vector<1x1xf32>
      %101 = arith.divf %100, %70 : vector<1x1xf32>
      %cst_53 = arith.constant 1.000000e+00 : f32
      %102 = vector.broadcast %cst_53 : f32 to vector<1x1xf32>
      %103 = arith.mulf %102, %93 : vector<1x1xf32>
      %cst_54 = arith.constant 1.000000e-01 : f32
      %104 = vector.broadcast %cst_54 : f32 to vector<1x1xf32>
      %105 = arith.mulf %104, %101 : vector<1x1xf32>
      %106 = arith.addf %103, %105 : vector<1x1xf32>
      %c0_55 = arith.constant 0 : index
      %c0_56 = arith.constant 0 : index
      %107 = vector.load %arg3[%c0_55, %c0_56] : memref<1x1xf32, #tpu.memory_space<vmem>>, vector<1x1xf32>
      tpu.vector_store %arg3[%c0_55, %c0_56], %106 {strides = array<i32>} : memref<1x1xf32, #tpu.memory_space<vmem>>, vector<1x1xf32>,
    } else {
    }
    return
  }
  func.func @transform_0(%arg0: i32) -> (i32, i32) {
    %c0_i32 = arith.constant 0 : i32
    %c0_i32_0 = arith.constant 0 : i32
    return %c0_i32, %arg0 : i32, i32
  }
  func.func @transform_1(%arg0: i32) -> (i32, i32) {
    %c0_i32 = arith.constant 0 : i32
    %c0_i32_0 = arith.constant 0 : i32
    return %c0_i32, %arg0 : i32, i32
  }
  func.func @transform_2(%arg0: i32) -> (i32, i32) {
    %c0_i32 = arith.constant 0 : i32
    %c0_i32_0 = arith.constant 0 : i32
    %c0_i32_1 = arith.constant 0 : i32
    return %c0_i32, %c0_i32_0 : i32, i32
  }
}

</mosaic_0001>

<llo_original>
// kernel: tpu_custom_call.1
$region0: #{tpu_custom_call.1}
  #allocation0 [shape = 'u32[]', space=smem, size = 0x4, offset = 0x4, fixed_abs, tag = 'smem constant byte address 0x4 - core index']
  #allocation1 [shape = 'u32[144,128]{1,0:T(1,128)}', space=vmem, size = 0x12000, scoped, tag = 'internal scratch']
  #allocation2 [shape = 'f32[16,1]{1,0:T(8,128)}', space=vmem, size = 0x2000, scoped, tag = 'scratch operand']
  #allocation3 [shape = 'f32[16,1]{1,0:T(8,128)}', space=vmem, size = 0x2000, scoped, tag = 'scratch operand']
  #allocation4 [shape = 'f32[1,1]{1,0:T(1,128)}', space=vmem, size = 0x200, scoped, tag = 'scratch operand']
  #allocation5 [shape = 'f32[1,1]{1,0:T(1,128)}', space=vmem, size = 0x200, scoped, tag = 'scratch operand']
  %s0 = inlined_call_operand.hbm [shape: f32[16,128], index: 0, kind: input, shape index: {}]
  %s1 = inlined_call_operand.vmem [shape: s32[1,128], index: 1, kind: input, shape index: {}]
  %s2 = inlined_call_operand.hbm [shape: f32[1,1], index: 2, kind: output, shape index: {}]
  %s3 = sld [smem:[#allocation0]]
  $region30: #{tpu_custom_call.1} parent=0
    _
  %s5 = ssub.s32 1, %s3
  %s6 = scalar_select 0, %s5, %s3
  $region1: #{tpu_custom_call.1} parent=0
    #allocation6 [shape = 'u8[8192]{0}', space=vmem, size = 0x2000, scoped, tag = 'input window, operand 0, single buffered']
    #allocation7 [shape = 's32[1]{0}', space=sflag, size = 0x4, scoped, tag = 'scoped memory for tpu_custom_call.1']
    #allocation8 [shape = 's32[1]{0}', space=sflag, size = 0x4, scoped, tag = 'scoped memory for tpu_custom_call.1']
    #allocation9 [shape = 'u8[512]{0}', space=vmem, size = 0x400, scoped, tag = 'output window, operand 0, single buffered']
    %7 = vsyncpa [#allocation7], 0
    %8 = vsyncpa [#allocation8], 0
    // Predicated region
    $region2: #{tpu_custom_call.1} parent=1 // pred_check
      _
    $region3: #{tpu_custom_call.1} parent=1 // pred_check_branch
      %10 = sbr.rel (0) target = $region5
    $region4: #{tpu_custom_call.1} parent=1 // pred_region
      %s12 = ssub.s32 256, 256
      %13 = vsyncadd [#allocation7], %s12
      %s14 = sshll.u32 [#allocation6], 4
      %s15 = int_to_ptr.vmem [resolvable:$true] %s14
      %20 = dma.hbm_to_vmem [thread:$0]  %s0, 256, %s15, [#allocation7], 128, 128, 8
    $region5: #{tpu_custom_call.1} parent=1 // pred_fallthru
      _
    // Predicated region
    $region6: #{tpu_custom_call.1} parent=1 // pred_check
      _
    $region7: #{tpu_custom_call.1} parent=1 // pred_check_branch
      %22 = sbr.rel (0) target = $region9
    $region8: #{tpu_custom_call.1} parent=1 // pred_region
      _
    $region9: #{tpu_custom_call.1} parent=1 // pred_fallthru
      _
    // Predicated region
    $region10: #{tpu_custom_call.1} parent=1 // pred_check
      _
    $region11: #{tpu_custom_call.1} parent=1 // pred_check_branch
      %24 = sbr.rel (0) target = $region13
    $region12: #{tpu_custom_call.1} parent=1 // pred_region
      %25 = dma.done [#allocation7], 256
    $region13: #{tpu_custom_call.1} parent=1 // pred_fallthru
      _
    %p26 = scmp.eq.s32.totalorder 0, 0
    // Predicated region
    $region14: #{tpu_custom_call.1} parent=1 // pred_check
      %p27 = pneg %p26
    $region15: #{tpu_custom_call.1} parent=1 // pred_check_branch
      %29 = sbr.rel (%p27) target = $region17
    $region16: #{tpu_custom_call.1} parent=1 // pred_region
      %vm30 = vcmask 7168
      %31 = vst.msk [vmem:[#allocation2] sm:$0xff] %vm30, 0.0
      %32 = vst.msk [vmem:[#allocation2 + $0x8] sm:$0xff] %vm30, 0.0
      %33 = vst.msk [vmem:[#allocation3] sm:$0xff] %vm30, 0.0
      %34 = vst.msk [vmem:[#allocation3 + $0x8] sm:$0xff] %vm30, 0.0
      %vm35 = vcmask 0
      %36 = vst.msk [vmem:[#allocation4] sm:$0x1] %vm35, 0.0
      %37 = vst.msk [vmem:[#allocation5] sm:$0x1] %vm35, 0.0
    $region17: #{tpu_custom_call.1} parent=1 // pred_fallthru
      _
    %v38 = vld [vmem:[#allocation6] sm:$0xff]
    %v39 = vld [vmem:[#allocation6 + $0x8] sm:$0xff]
    %v40 = vld [vmem:[%s1] sm:$0x1]
    %v41 = vlaneseq
    %v42 = vshrl.u32 %v41, 7
    %v43 = vadd.s32 %v42, 8
    %v44 = vlaneseq
    %v45 = vshrl.u32 %v44, 7
    %v46 = vsub.s32 0, %v45
    %v47 = vrot.slane %v40, %v46
    %vm48 = vcmp.eq.s32.totalorder %v47, %v42
    %vm49 = vcmp.eq.s32.totalorder %v47, %v43
    %v50 = vsel %vm48, 1, 0
    %v51 = vsel %vm49, 1, 0
    %v52 = vcvt.s32.f32 %v50
    %v53 = vcvt.s32.f32 %v51
    %v54 = vmax.f32 %v38, %v39
    %v55 = vrot.slane %v54, 4
    %v56 = vmax.f32 %v54, %v55
    %v57 = vrot.slane %v56, 2
    %v58 = vmax.f32 %v56, %v57
    %v59 = vrot.slane %v58, 1
    %v60 = vmax.f32 %v58, %v59
    %v61 = vsub.f32 %v38, %v60
    %v62 = vsub.f32 %v39, %v60
    %v63 = vmul.f32 %v61, 1.442695
    %v64 = vpow.pop %v63
    %v65 = vmul.f32 %v62, 1.442695
    %v66 = vpow.pop %v65
    %v67 = vadd.f32 %v64, %v66
    %v68 = vrot.slane %v67, 4
    %v69 = vadd.f32 %v67, %v68
    %v70 = vrot.slane %v69, 2
    %v71 = vadd.f32 %v69, %v70
    %v72 = vrot.slane %v71, 1
    %v73 = vadd.f32 %v71, %v72
    %v74 = vlog2.pop %v73
    %v75 = vmul.f32 %v74, 0.6931472
    %v76 = vsub.f32 %v61, %v75
    %v77 = vsub.f32 %v62, %v75
    %v78 = vmul.f32 %v52, %v76
    %v79 = vmul.f32 %v53, %v77
    %v80 = vadd.f32 %v78, %v79
    %v81 = vrot.slane %v80, 4
    %v82 = vadd.f32 %v80, %v81
    %v83 = vrot.slane %v82, 2
    %v84 = vadd.f32 %v82, %v83
    %v85 = vrot.slane %v84, 1
    %v86 = vadd.f32 %v84, %v85
    %v87 = vsub.f32 0.0, %v86
    %v88 = vadd.f32 %v52, %v53
    %v89 = vrot.slane %v88, 4
    %v90 = vadd.f32 %v88, %v89
    %v91 = vrot.slane %v90, 2
    %v92 = vadd.f32 %v90, %v91
    %v93 = vrot.slane %v92, 1
    %v94 = vadd.f32 %v92, %v93
    %v95 = vsub.f32 0.0, %v87
    %v96 = vmul.f32 %v95, 1.442695
    %v97 = vpow.pop %v96
    %v98 = vsub.f32 1.0, %v97
    %v99 = vmul.f32 %v98, 2.0
    %v100 = vmax.f32 %v98, 1e-30
    %v101 = vlog2.pop %v100
    %v102 = vmul.f32 %v101, 0.6931472
    %v103 = vmul.f32 %v99, %v102
    %v104 = vmul.f32 %v103, 1.442695
    %v105 = vpow.pop %v104
    %v106 = vmul.f32 %v105, %v87
    %v107 = vld [vmem:[#allocation2] sm:$0xff]
    %v108 = vld [vmem:[#allocation2 + $0x8] sm:$0xff]
    %109 = vadd.xlane.f32.xlu0 %v52
    %v110 = vpop.xlane.xlu0 %109
    %111 = vadd.xlane.f32.xlu0 %v53
    %v112 = vpop.xlane.xlu0 %111
    %v113 = vadd.f32 %v107, %v110
    %v114 = vadd.f32 %v108, %v112
    %vm115 = vcmask 7168
    %116 = vst.msk [vmem:[#allocation2] sm:$0xff] %vm115, %v113
    %117 = vst.msk [vmem:[#allocation2 + $0x8] sm:$0xff] %vm115, %v114
    %v118 = vld [vmem:[#allocation3] sm:$0xff]
    %v119 = vld [vmem:[#allocation3 + $0x8] sm:$0xff]
    %v120 = vmul.f32 %v52, %v106
    %v121 = vmul.f32 %v53, %v106
    %122 = vadd.xlane.f32.xlu0 %v120
    %v123 = vpop.xlane.xlu0 %122
    %124 = vadd.xlane.f32.xlu0 %v121
    %v125 = vpop.xlane.xlu0 %124
    %v126 = vadd.f32 %v118, %v123
    %v127 = vadd.f32 %v119, %v125
    %128 = vst.msk [vmem:[#allocation3] sm:$0xff] %vm115, %v126
    %129 = vst.msk [vmem:[#allocation3 + $0x8] sm:$0xff] %vm115, %v127
    %v130 = vld [vmem:[#allocation4] sm:$0x1]
    %131 = vadd.xlane.f32.xlu0 %v87
    %v132 = vpop.xlane.xlu0 %131
    %v133 = vadd.f32 %v130, %v132
    %vm134 = vcmask 0
    %135 = vst.msk [vmem:[#allocation4] sm:$0x1] %vm134, %v133
    %v136 = vld [vmem:[#allocation5] sm:$0x1]
    %v137 = vadd.f32 %v76, %v77
    %v138 = vrot.slane %v137, 4
    %v139 = vadd.f32 %v137, %v138
    %v140 = vrot.slane %v139, 2
    %v141 = vadd.f32 %v139, %v140
    %v142 = vrot.slane %v141, 1
    %v143 = vadd.f32 %v141, %v142
    %v144 = vmul.f32 %v94, %v143
    %145 = vadd.xlane.f32.xlu0 %v144
    %v146 = vpop.xlane.xlu0 %145
    %v147 = vadd.f32 %v136, %v146
    %148 = vst.msk [vmem:[#allocation5] sm:$0x1] %vm134, %v147
    // Predicated region
    $region18: #{tpu_custom_call.1} parent=1 // pred_check
      %p149 = pneg %p26
    $region19: #{tpu_custom_call.1} parent=1 // pred_check_branch
      %151 = sbr.rel (%p149) target = $region21
    $region20: #{tpu_custom_call.1} parent=1 // pred_region
      %v152 = vld [vmem:[#allocation2] sm:$0xff]
      %v153 = vld [vmem:[#allocation2 + $0x8] sm:$0xff]
      %v154 = vsel %vm115, %v152, 0.0
      %v155 = vsel %vm115, %v153, 0.0
      %v156 = vadd.f32 %v154, %v155
      %v157 = vrot.slane %v156, 4
      %v158 = vadd.f32 %v156, %v157
      %v159 = vrot.slane %v158, 2
      %v160 = vadd.f32 %v158, %v159
      %v161 = vrot.slane %v160, 1
      %v162 = vadd.f32 %v160, %v161
      %v163 = vadd.f32 %v162, 1e-06
      %v164 = vrcp.pop %v163
      %v165 = vmul.f32 %v152, %v164
      %v166 = vmul.f32 %v153, %v164
      %v167 = vmul.f32 %v152, -0.0010005003
      %v168 = vmul.f32 %v153, -0.0010005003
      %v169 = vmul.f32 %v167, 1.442695
      %v170 = vpow.pop %v169
      %v171 = vmul.f32 %v168, 1.442695
      %v172 = vpow.pop %v171
      %v173 = vsub.f32 1.0, %v170
      %v174 = vsub.f32 1.0, %v172
      %v175 = vsub.f32 1.0, %v165
      %v176 = vsub.f32 1.0, %v166
      %v177 = vadd.f32 %v173, 1e-06
      %v178 = vadd.f32 %v174, 1e-06
      %v179 = vrcp.pop %v177
      %v180 = vmul.f32 %v175, %v179
      %v181 = vrcp.pop %v178
      %v182 = vmul.f32 %v176, %v181
      %v183 = vsel %vm115, %v180, 0.0
      %v184 = vsel %vm115, %v182, 0.0
      %v185 = vadd.f32 %v183, %v184
      %v186 = vrot.slane %v185, 4
      %v187 = vadd.f32 %v185, %v186
      %v188 = vrot.slane %v187, 2
      %v189 = vadd.f32 %v187, %v188
      %v190 = vrot.slane %v189, 1
      %v191 = vadd.f32 %v189, %v190
      %v192 = vrcp.pop %v191
      %v193 = vmul.f32 %v180, %v192
      %v194 = vmul.f32 %v182, %v192
      %v195 = vld [vmem:[#allocation3] sm:$0xff]
      %v196 = vld [vmem:[#allocation3 + $0x8] sm:$0xff]
      %v197 = vmul.f32 %v193, %v195
      %v198 = vmul.f32 %v194, %v196
      %v199 = vsel %vm115, %v197, 0.0
      %v200 = vsel %vm115, %v198, 0.0
      %v201 = vadd.f32 %v199, %v200
      %v202 = vrot.slane %v201, 4
      %v203 = vadd.f32 %v201, %v202
      %v204 = vrot.slane %v203, 2
      %v205 = vadd.f32 %v203, %v204
      %v206 = vrot.slane %v205, 1
      %v207 = vadd.f32 %v205, %v206
      %v208 = vrcp.pop %v162
      %v209 = vmul.f32 %v207, %v208
      %v210 = vld [vmem:[#allocation5] sm:$0x1]
      %v211 = vmul.f32 %v210, -0.006666667
      %v212 = vld [vmem:[#allocation4] sm:$0x1]
      %v213 = vmul.f32 %v212, 0.8933333
      %v214 = vadd.f32 %v211, %v213
      %v215 = vmul.f32 %v214, %v208
      %v216 = vmul.f32 %v215, 0.1
      %v217 = vadd.f32 %v209, %v216
      %218 = vst.msk [vmem:[#allocation9] sm:$0x1] %vm134, %v217
    $region21: #{tpu_custom_call.1} parent=1 // pred_fallthru
      _
    // Predicated region
    $region22: #{tpu_custom_call.1} parent=1 // pred_check
      _
    $region23: #{tpu_custom_call.1} parent=1 // pred_check_branch
      %220 = sbr.rel (0) target = $region25
    $region24: #{tpu_custom_call.1} parent=1 // pred_region
      %s222 = ssub.s32 16, 16
      %223 = vsyncadd [#allocation8], %s222
      %s225 = sshll.u32 [#allocation9], 4
      %s226 = int_to_ptr.vmem [resolvable:$true] %s225
      %228 = dma.vmem_to_hbm [thread:$0]  %s226, 16, %s2, [#allocation8]
    $region25: #{tpu_custom_call.1} parent=1 // pred_fallthru
      _
    // Predicated region
    $region26: #{tpu_custom_call.1} parent=1 // pred_check
      _
    $region27: #{tpu_custom_call.1} parent=1 // pred_check_branch
      %230 = sbr.rel (0) target = $region29
    $region28: #{tpu_custom_call.1} parent=1 // pred_region
      %231 = dma.done [#allocation8], 16
    $region29: #{tpu_custom_call.1} parent=1 // pred_fallthru
      _
    %232 = vsyncpa [#allocation7], 1
    %233 = vsyncpa [#allocation8], 1

</llo_original>
